<compile_context>
chip_gen: v5e
topology: v5e:2x2
jax: 0.10.0
libtpu: 0.0.40
codegen_flags: <defaults>
</compile_context>

<pallas_src>
import functools

import jax
import jax.numpy as jnp
from jax.experimental import pallas as pl
from jax.experimental.pallas import tpu as pltpu

# Row layout of the f32 slab: biases at rows 0/8/16/24/32/40, f32 bet1 weight below.
_BET_W_ROW = 48


# ----------------------------- Pallas kernel ---------------------------------
def _deepcfr_kernel(card_slots, dim,
                    cards_ref, bets_ref, wslab_ref, fslab_ref, ahw_ref, ahb_ref,
                    out_ref):
    f32, bf16 = jnp.float32, jnp.bfloat16
    D2 = 2 * dim
    T = len(card_slots)
    nbf = bets_ref.shape[1]                       # 2 * nbets

    def mm(a, w):                                 # bf16 MXU operands, f32 accumulate
        return jnp.dot(a.astype(bf16), w, preferred_element_type=f32)

    def relu(v):
        return jnp.maximum(v, 0.0)

    # ---- fused layer 1: [card1 | bet1] ---------------------------------------
    # Bet half in full f32 (bet sizes may be large; K = 2*nbets is tiny).
    acc = jnp.dot(bets_ref[...], fslab_ref[_BET_W_ROW:_BET_W_ROW + nbf, :],
                  preferred_element_type=f32)                       # (TM, 2D)

    # Card half: per-group masked bf16 one-hot counts -> folded-embedding matmul.
    cards = cards_ref[...]                                          # (TM, n_slots) int32
    lane = jax.lax.broadcasted_iota(jnp.int32, (1, D2), 1)          # 0..2D-1 (cards 0..51)
    col = 0
    for t, n in enumerate(card_slots):                              # static loop, 7 slots
        counts = None
        for _ in range(n):
            c = cards[:, col:col + 1]                               # (TM, 1)
            hit = ((c == lane) & (c >= 0)).astype(bf16)             # (TM, 2D) one-hot
            counts = hit if counts is None else counts + hit
            col += 1
        acc = acc + jnp.dot(counts, wslab_ref[D2 * t:D2 * (t + 1), :],
                            preferred_element_type=f32)

    bet_mask = (lane >= dim).astype(f32)          # residual/passthrough on bet half only
    wo = D2 * T                                   # start of block-diag layer weights

    h = relu(acc + fslab_ref[0:1, :])
    # layer 2: [card2 | bet2 + residual]
    h = relu(mm(h, wslab_ref[wo:wo + D2, :]) + fslab_ref[8:9, :] + h * bet_mask)
    # layer 3: [card3 | passthrough]
    h = relu(mm(h, wslab_ref[wo + D2:wo + 2 * D2, :]) + fslab_ref[16:17, :] + h * bet_mask)
    # trunk (comb1..3, zero-padded to 2D lanes -> MXU cost unchanged)
    z = relu(mm(h, wslab_ref[wo + 2 * D2:wo + 3 * D2, :]) + fslab_ref[24:25, :])
    z = relu(mm(z, wslab_ref[wo + 3 * D2:wo + 4 * D2, :]) + fslab_ref[32:33, :] + z)
    z = relu(mm(z, wslab_ref[wo + 4 * D2:wo + 5 * D2, :]) + fslab_ref[40:41, :] + z)

    # F.normalize(z): z / max(||z||_2, 1e-12) == z * rsqrt(max(sumsq, 1e-24))
    sumsq = jnp.sum(z * z, axis=1, keepdims=True)
    z = z * jax.lax.rsqrt(jnp.maximum(sumsq, 1e-24))

    # ---- action head (lane-padded to 128 for unmasked stores) ----------------
    out_ref[...] = mm(z, ahw_ref[...]) + ahb_ref[...]


# ----------------------------- wrapper (glue) ---------------------------------
def deepcfr_forward(cards, bets, params, *, tm=1024):
    """cards: tuple of int32 (N, n_cards_t); bets: f32 (N, nbets)."""
    f32, bf16 = jnp.float32, jnp.bfloat16
    N, nbets = bets.shape
    T = len(cards)
    D = params['card2_w'].shape[0]
    D2 = 2 * D
    nactions = params['ah_w'].shape[1]
    card_slots = tuple(int(c.shape[1]) for c in cards)
    n_slots = sum(card_slots)

    def rup(a, b):
        return (a + b - 1) // b * b

    # --- fold embedding tables into card1, build fused block-diag weights -----
    idx = jnp.arange(52)
    tables = jnp.stack(
        [params['card_w'][t] + params['rank_w'][t][idx // 4] + params['suit_w'][t][idx % 4]
         for t in range(T)], axis=0)                                 # (T, 52, D)
    c1w = params['card1_w'].reshape(T, D, D)
    emb = jnp.einsum('tkd,tdo->tko', tables, c1w)                    # (T, 52, D)
    emb_pad = jnp.zeros((T, D2, D2), f32).at[:, :52, :D].set(emb)    # card half of layer 1

    def card_block(a):                                               # (D,D) in card quadrant
        return jnp.zeros((D2, D2), f32).at[:D, :D].set(a)

    W2 = card_block(params['card2_w']).at[D:, D:].set(params['bet2_w'])
    W3 = card_block(params['card3_w'])                               # bet half: passthrough
    K1 = jnp.zeros((D2, D2), f32).at[:, :D].set(params['comb1_w'])   # comb1_w is (2D, D)
    K2 = card_block(params['comb2_w'])
    K3 = card_block(params['comb3_w'])
    wslab = jnp.concatenate([emb_pad.reshape(T * D2, D2), W2, W3, K1, K2, K3],
                            axis=0).astype(bf16)                     # ((T+5)*2D, 2D) bf16

    # f32 slab: bias rows at 0/8/16/24/32/40, f32 bet1 weight at _BET_W_ROW.
    frows = rup(_BET_W_ROW + 2 * nbets, 8)
    fslab = jnp.zeros((frows, D2), f32)

    def bias_row(slab, row, cb, bb=None):
        slab = slab.at[row, :D].set(cb.reshape(-1))
        if bb is not None:
            slab = slab.at[row, D:].set(bb.reshape(-1))
        return slab

    fslab = bias_row(fslab, 0, params['card1_b'], params['bet1_b'])
    fslab = bias_row(fslab, 8, params['card2_b'], params['bet2_b'])
    fslab = bias_row(fslab, 16, params['card3_b'])
    fslab = bias_row(fslab, 24, params['comb1_b'])
    fslab = bias_row(fslab, 32, params['comb2_b'])
    fslab = bias_row(fslab, 40, params['comb3_b'])
    fslab = fslab.at[_BET_W_ROW:_BET_W_ROW + 2 * nbets, D:].set(params['bet1_w'])

    OUT_LANES = max(128, rup(nactions, 128))                         # lane-dense action head
    ahw = jnp.zeros((D2, OUT_LANES), f32).at[:D, :nactions].set(params['ah_w']).astype(bf16)
    ahb = jnp.zeros((1, OUT_LANES), f32).at[:, :nactions].set(params['ah_b'])

    # --- batch inputs (bet features precomputed; raw int32 card indices) ------
    cards_all = jnp.concatenate([c.astype(jnp.int32) for c in cards], axis=1)
    bet_feats = jnp.concatenate(
        [jnp.clip(bets.astype(f32), 0.0, 1e6), (bets >= 0.0).astype(f32)], axis=1)

    # --- batch tiling ----------------------------------------------------------
    TM = min(tm, rup(N, 8))
    N_pad = rup(N, TM)
    if N_pad // TM < 2 and N > 8:        # >=2 grid steps so both v7x TCs get work
        TM = rup((N + 1) // 2, 8)
        N_pad = rup(N, TM)
    grid = (N_pad // TM,)

    cards_all = jnp.pad(cards_all, ((0, N_pad - N), (0, 0)), constant_values=-1)
    bet_feats = jnp.pad(bet_feats, ((0, N_pad - N), (0, 0)))

    def row_spec(cols):
        return pl.BlockSpec((TM, cols), lambda i: (i, 0))

    def w_spec(a):                                                   # VMEM-resident weights
        return pl.BlockSpec(a.shape, lambda i: (0,) * a.ndim)

    out = pl.pallas_call(
        functools.partial(_deepcfr_kernel, card_slots, D),
        out_shape=jax.ShapeDtypeStruct((N_pad, OUT_LANES), f32),
        grid=grid,
        in_specs=[row_spec(n_slots), row_spec(2 * nbets),
                  w_spec(wslab), w_spec(fslab), w_spec(ahw), w_spec(ahb)],
        out_specs=row_spec(OUT_LANES),
        compiler_params=pltpu.CompilerParams(
            dimension_semantics=("parallel",),
            vmem_limit_bytes=48 * 1024 * 1024),
    )(cards_all, bet_feats, wslab, fslab, ahw, ahb)

    return out[:N, :nactions]


# --------------------------- params / reference --------------------------------
def init_params(key, ncardtypes, nbets, nactions, dim):
    keys = iter(jax.random.split(key, 64))

    def nrm(shape, scale):
        return jax.random.normal(next(keys), shape, jnp.float32) * scale

    def lin(fan_in, fan_out):
        s = float(fan_in) ** -0.5
        return nrm((fan_in, fan_out), s), nrm((1, fan_out), s)

    p = {
        'card_w': [nrm((52, dim), 0.1) for _ in range(ncardtypes)],
        'rank_w': [nrm((13, dim), 0.1) for _ in range(ncardtypes)],
        'suit_w': [nrm((4, dim), 0.1) for _ in range(ncardtypes)],
    }
    p['card1_w'], p['card1_b'] = lin(dim * ncardtypes, dim)
    p['card2_w'], p['card2_b'] = lin(dim, dim)
    p['card3_w'], p['card3_b'] = lin(dim, dim)
    p['bet1_w'], p['bet1_b'] = lin(nbets * 2, dim)
    p['bet2_w'], p['bet2_b'] = lin(dim, dim)
    p['comb1_w'], p['comb1_b'] = lin(2 * dim, dim)
    p['comb2_w'], p['comb2_b'] = lin(dim, dim)
    p['comb3_w'], p['comb3_b'] = lin(dim, dim)
    p['ah_w'], p['ah_b'] = lin(dim, nactions)
    return p


def reference_forward(cards, bets, params):
    """Pure-JAX f32 mirror of the PyTorch forward (gather-based CardEmbedding)."""
    relu = jax.nn.relu
    card_embs = []
    for t, cg in enumerate(cards):
        B, nc = cg.shape
        x = cg.reshape(-1)
        valid = (x >= 0).astype(jnp.float32)[:, None]
        xc = jnp.maximum(x, 0)
        embs = (params['card_w'][t][xc] + params['rank_w'][t][xc // 4]
                + params['suit_w'][t][xc % 4]) * valid
        card_embs.append(embs.reshape(B, nc, -1).sum(1))
    ce = jnp.concatenate(card_embs, axis=1)
    x = relu(ce @ params['card1_w'] + params['card1_b'])
    x = relu(x @ params['card2_w'] + params['card2_b'])
    x = relu(x @ params['card3_w'] + params['card3_b'])
    bet_size = jnp.clip(bets, 0.0, 1e6)
    bet_occ = (bets >= 0).astype(jnp.float32)
    bf = jnp.concatenate([bet_size, bet_occ], axis=1)
    y = relu(bf @ params['bet1_w'] + params['bet1_b'])
    y = relu(y @ params['bet2_w'] + params['bet2_b'] + y)
    z = jnp.concatenate([x, y], axis=1)
    z = relu(z @ params['comb1_w'] + params['comb1_b'])
    z = relu(z @ params['comb2_w'] + params['comb2_b'] + z)
    z = relu(z @ params['comb3_w'] + params['comb3_b'] + z)
    norm = jnp.sqrt(jnp.sum(z * z, axis=1, keepdims=True))
    z = z / jnp.maximum(norm, 1e-12)
    return z @ params['ah_w'] + params['ah_b']


# ----------------------------------- main ---------------------------------------
if __name__ == "__main__":
    dim = 32
    ncardtypes, nbets, nactions = 4, 8, 5

    key = jax.random.PRNGKey(0)
    kp, kd = jax.random.split(key)
    params = init_params(kp, ncardtypes, nbets, nactions, dim)

    def make_inputs(k, n):
        k0, k1, k2, k3, k4 = jax.random.split(k, 5)
        hole = jax.random.randint(k0, (n, 2), 0, 52, dtype=jnp.int32)
        flop = jax.random.randint(k1, (n, 3), 0, 52, dtype=jnp.int32)
        turn = jax.random.randint(k2, (n, 1), -1, 52, dtype=jnp.int32)   # -1 = no card
        river = jax.random.randint(k3, (n, 1), -1, 52, dtype=jnp.int32)  # -1 = no card
        bets = jax.random.uniform(k4, (n, nbets), jnp.float32, -2.0, 50.0)
        return (hole, flop, turn, river), bets

    # single-tile case (grid of 1)
    cards, bets = make_inputs(kd, 4)
    out = jax.block_until_ready(deepcfr_forward(cards, bets, params))
    ref = reference_forward(cards, bets, params)
    if not bool(jnp.allclose(out, ref, atol=2e-2, rtol=2e-2)):
        raise AssertionError("Pallas kernel output does not match JAX reference (N=4)")

    # default tiling: auto-split into 2 grid steps (exercises padding + 2-step grid)
    cards2, bets2 = make_inputs(jax.random.fold_in(kd, 1), 20)
    out2 = jax.block_until_ready(deepcfr_forward(cards2, bets2, params))
    ref2 = reference_forward(cards2, bets2, params)
    if not bool(jnp.allclose(out2, ref2, atol=2e-2, rtol=2e-2)):
        raise AssertionError("Pallas kernel output does not match JAX reference (N=20)")

    # small explicit tile (3 batch tiles of 8, exercises row pipelining)
    out3 = jax.block_until_ready(deepcfr_forward(cards2, bets2, params, tm=8))
    if not bool(jnp.allclose(out3, ref2, atol=2e-2, rtol=2e-2)):
        raise AssertionError("Pallas kernel output does not match JAX reference (N=20, tm=8)")

    print("KERNEL_OK")
</pallas_src>

<mosaic_0001>
module attributes {stable_mosaic.version = 11 : i64} {
  func.func @_deepcfr_kernel(%arg0: i32, %arg1: memref<8x7xi32, #tpu.memory_space<vmem>>, %arg2: memref<8x16xf32, #tpu.memory_space<vmem>>, %arg3: memref<576x64xbf16, #tpu.memory_space<vmem>>, %arg4: memref<64x64xf32, #tpu.memory_space<vmem>>, %arg5: memref<64x128xbf16, #tpu.memory_space<vmem>>, %arg6: memref<1x128xf32, #tpu.memory_space<vmem>>, %arg7: memref<8x128xf32, #tpu.memory_space<vmem>>) attributes {dimension_semantics = [#tpu.dimension_semantics<parallel>], iteration_bounds = array<i64: 1>, scalar_prefetch = 0 : i64, scratch_operands = 0 : i64, tpu.core_type = #tpu.core_type<tc>, window_params = [{transform_indices = @transform_0, window_bounds = array<i64: 8, 7>}, {transform_indices = @transform_1, window_bounds = array<i64: 8, 16>}, {pipeline_mode = #tpu.pipeline_mode<synchronous>, transform_indices = @transform_2, window_bounds = array<i64: 576, 64>}, {pipeline_mode = #tpu.pipeline_mode<synchronous>, transform_indices = @transform_3, window_bounds = array<i64: 64, 64>}, {pipeline_mode = #tpu.pipeline_mode<synchronous>, transform_indices = @transform_4, window_bounds = array<i64: 64, 128>}, {pipeline_mode = #tpu.pipeline_mode<synchronous>, transform_indices = @transform_5, window_bounds = array<i64: 1, 128>}, {transform_indices = @transform_6, window_bounds = array<i64: 8, 128>}]} {
    %c0 = arith.constant 0 : index
    %c0_0 = arith.constant 0 : index
    %0 = vector.load %arg2[%c0, %c0_0] : memref<8x16xf32, #tpu.memory_space<vmem>>, vector<8x16xf32>
    %c48 = arith.constant 48 : index
    %c0_1 = arith.constant 0 : index
    %1 = vector.load %arg4[%c48, %c0_1] : memref<64x64xf32, #tpu.memory_space<vmem>>, vector<16x64xf32>
    %cst = arith.constant dense<0.000000e+00> : vector<8x64xf32>
    %2 = tpu.matmul %0, %1, %cst {dimension_numbers = #tpu.dot_dimension_numbers<[1], [0], [0], [1], [0, 0, 1, 1], [], []>} : vector<8x16xf32>, vector<16x64xf32>, vector<8x64xf32> -> vector<8x64xf32>
    %c0_2 = arith.constant 0 : index
    %c0_3 = arith.constant 0 : index
    %3 = vector.load %arg1[%c0_2, %c0_3] : memref<8x7xi32, #tpu.memory_space<vmem>>, vector<8x7xi32>
    %4 = tpu.iota {dimensions = array<i32: 1>} : vector<1x64xi32>
    %5 = vector.extract_strided_slice %3 {offsets = [0, 0], sizes = [8, 1], strides = [1, 1]} : vector<8x7xi32> to vector<8x1xi32>
    %6 = vector.broadcast %5 : vector<8x1xi32> to vector<8x64xi32>
    %7 = vector.broadcast %4 : vector<1x64xi32> to vector<8x64xi32>
    %8 = arith.cmpi eq, %6, %7 : vector<8x64xi32>
    %c0_i32 = arith.constant 0 : i32
    %9 = vector.broadcast %c0_i32 : i32 to vector<8x1xi32>
    %10 = arith.cmpi sge, %5, %9 : vector<8x1xi32>
    %11 = vector.broadcast %10 : vector<8x1xi1> to vector<8x64xi1>
    %12 = arith.andi %8, %11 : vector<8x64xi1>
    %13 = arith.extui %12 : vector<8x64xi1> to vector<8x64xi32>
    %14 = arith.sitofp %13 : vector<8x64xi32> to vector<8x64xf32>
    %15 = arith.truncf %14 : vector<8x64xf32> to vector<8x64xbf16>
    %16 = vector.extract_strided_slice %3 {offsets = [0, 1], sizes = [8, 1], strides = [1, 1]} : vector<8x7xi32> to vector<8x1xi32>
    %17 = vector.broadcast %16 : vector<8x1xi32> to vector<8x64xi32>
    %18 = vector.broadcast %4 : vector<1x64xi32> to vector<8x64xi32>
    %19 = arith.cmpi eq, %17, %18 : vector<8x64xi32>
    %c0_i32_4 = arith.constant 0 : i32
    %20 = vector.broadcast %c0_i32_4 : i32 to vector<8x1xi32>
    %21 = arith.cmpi sge, %16, %20 : vector<8x1xi32>
    %22 = vector.broadcast %21 : vector<8x1xi1> to vector<8x64xi1>
    %23 = arith.andi %19, %22 : vector<8x64xi1>
    %24 = arith.extui %23 : vector<8x64xi1> to vector<8x64xi32>
    %25 = arith.sitofp %24 : vector<8x64xi32> to vector<8x64xf32>
    %26 = arith.truncf %25 : vector<8x64xf32> to vector<8x64xbf16>
    %27 = arith.addf %15, %26 : vector<8x64xbf16>
    %c0_5 = arith.constant 0 : index
    %c0_6 = arith.constant 0 : index
    %28 = vector.load %arg3[%c0_5, %c0_6] : memref<576x64xbf16, #tpu.memory_space<vmem>>, vector<64x64xbf16>
    %cst_7 = arith.constant dense<0.000000e+00> : vector<8x64xf32>
    %29 = tpu.matmul %27, %28, %cst_7 {dimension_numbers = #tpu.dot_dimension_numbers<[1], [0], [0], [1], [0, 0, 1, 1], [], []>} : vector<8x64xbf16>, vector<64x64xbf16>, vector<8x64xf32> -> vector<8x64xf32>
    %30 = arith.addf %2, %29 : vector<8x64xf32>
    %31 = vector.extract_strided_slice %3 {offsets = [0, 2], sizes = [8, 1], strides = [1, 1]} : vector<8x7xi32> to vector<8x1xi32>
    %32 = vector.broadcast %31 : vector<8x1xi32> to vector<8x64xi32>
    %33 = vector.broadcast %4 : vector<1x64xi32> to vector<8x64xi32>
    %34 = arith.cmpi eq, %32, %33 : vector<8x64xi32>
    %c0_i32_8 = arith.constant 0 : i32
    %35 = vector.broadcast %c0_i32_8 : i32 to vector<8x1xi32>
    %36 = arith.cmpi sge, %31, %35 : vector<8x1xi32>
    %37 = vector.broadcast %36 : vector<8x1xi1> to vector<8x64xi1>
    %38 = arith.andi %34, %37 : vector<8x64xi1>
    %39 = arith.extui %38 : vector<8x64xi1> to vector<8x64xi32>
    %40 = arith.sitofp %39 : vector<8x64xi32> to vector<8x64xf32>
    %41 = arith.truncf %40 : vector<8x64xf32> to vector<8x64xbf16>
    %42 = vector.extract_strided_slice %3 {offsets = [0, 3], sizes = [8, 1], strides = [1, 1]} : vector<8x7xi32> to vector<8x1xi32>
    %43 = vector.broadcast %42 : vector<8x1xi32> to vector<8x64xi32>
    %44 = vector.broadcast %4 : vector<1x64xi32> to vector<8x64xi32>
    %45 = arith.cmpi eq, %43, %44 : vector<8x64xi32>
    %c0_i32_9 = arith.constant 0 : i32
    %46 = vector.broadcast %c0_i32_9 : i32 to vector<8x1xi32>
    %47 = arith.cmpi sge, %42, %46 : vector<8x1xi32>
    %48 = vector.broadcast %47 : vector<8x1xi1> to vector<8x64xi1>
    %49 = arith.andi %45, %48 : vector<8x64xi1>
    %50 = arith.extui %49 : vector<8x64xi1> to vector<8x64xi32>
    %51 = arith.sitofp %50 : vector<8x64xi32> to vector<8x64xf32>
    %52 = arith.truncf %51 : vector<8x64xf32> to vector<8x64xbf16>
    %53 = arith.addf %41, %52 : vector<8x64xbf16>
    %54 = vector.extract_strided_slice %3 {offsets = [0, 4], sizes = [8, 1], strides = [1, 1]} : vector<8x7xi32> to vector<8x1xi32>
    %55 = vector.broadcast %54 : vector<8x1xi32> to vector<8x64xi32>
    %56 = vector.broadcast %4 : vector<1x64xi32> to vector<8x64xi32>
    %57 = arith.cmpi eq, %55, %56 : vector<8x64xi32>
    %c0_i32_10 = arith.constant 0 : i32
    %58 = vector.broadcast %c0_i32_10 : i32 to vector<8x1xi32>
    %59 = arith.cmpi sge, %54, %58 : vector<8x1xi32>
    %60 = vector.broadcast %59 : vector<8x1xi1> to vector<8x64xi1>
    %61 = arith.andi %57, %60 : vector<8x64xi1>
    %62 = arith.extui %61 : vector<8x64xi1> to vector<8x64xi32>
    %63 = arith.sitofp %62 : vector<8x64xi32> to vector<8x64xf32>
    %64 = arith.truncf %63 : vector<8x64xf32> to vector<8x64xbf16>
    %65 = arith.addf %53, %64 : vector<8x64xbf16>
    %c64 = arith.constant 64 : index
    %c0_11 = arith.constant 0 : index
    %66 = vector.load %arg3[%c64, %c0_11] : memref<576x64xbf16, #tpu.memory_space<vmem>>, vector<64x64xbf16>
    %cst_12 = arith.constant dense<0.000000e+00> : vector<8x64xf32>
    %67 = tpu.matmul %65, %66, %cst_12 {dimension_numbers = #tpu.dot_dimension_numbers<[1], [0], [0], [1], [0, 0, 1, 1], [], []>} : vector<8x64xbf16>, vector<64x64xbf16>, vector<8x64xf32> -> vector<8x64xf32>
    %68 = arith.addf %30, %67 : vector<8x64xf32>
    %69 = vector.extract_strided_slice %3 {offsets = [0, 5], sizes = [8, 1], strides = [1, 1]} : vector<8x7xi32> to vector<8x1xi32>
    %70 = vector.broadcast %69 : vector<8x1xi32> to vector<8x64xi32>
    %71 = vector.broadcast %4 : vector<1x64xi32> to vector<8x64xi32>
    %72 = arith.cmpi eq, %70, %71 : vector<8x64xi32>
    %c0_i32_13 = arith.constant 0 : i32
    %73 = vector.broadcast %c0_i32_13 : i32 to vector<8x1xi32>
    %74 = arith.cmpi sge, %69, %73 : vector<8x1xi32>
    %75 = vector.broadcast %74 : vector<8x1xi1> to vector<8x64xi1>
    %76 = arith.andi %72, %75 : vector<8x64xi1>
    %77 = arith.extui %76 : vector<8x64xi1> to vector<8x64xi32>
    %78 = arith.sitofp %77 : vector<8x64xi32> to vector<8x64xf32>
    %79 = arith.truncf %78 : vector<8x64xf32> to vector<8x64xbf16>
    %c128 = arith.constant 128 : index
    %c0_14 = arith.constant 0 : index
    %80 = vector.load %arg3[%c128, %c0_14] : memref<576x64xbf16, #tpu.memory_space<vmem>>, vector<64x64xbf16>
    %cst_15 = arith.constant dense<0.000000e+00> : vector<8x64xf32>
    %81 = tpu.matmul %79, %80, %cst_15 {dimension_numbers = #tpu.dot_dimension_numbers<[1], [0], [0], [1], [0, 0, 1, 1], [], []>} : vector<8x64xbf16>, vector<64x64xbf16>, vector<8x64xf32> -> vector<8x64xf32>
    %82 = arith.addf %68, %81 : vector<8x64xf32>
    %83 = vector.extract_strided_slice %3 {offsets = [0, 6], sizes = [8, 1], strides = [1, 1]} : vector<8x7xi32> to vector<8x1xi32>
    %84 = vector.broadcast %83 : vector<8x1xi32> to vector<8x64xi32>
    %85 = vector.broadcast %4 : vector<1x64xi32> to vector<8x64xi32>
    %86 = arith.cmpi eq, %84, %85 : vector<8x64xi32>
    %c0_i32_16 = arith.constant 0 : i32
    %87 = vector.broadcast %c0_i32_16 : i32 to vector<8x1xi32>
    %88 = arith.cmpi sge, %83, %87 : vector<8x1xi32>
    %89 = vector.broadcast %88 : vector<8x1xi1> to vector<8x64xi1>
    %90 = arith.andi %86, %89 : vector<8x64xi1>
    %91 = arith.extui %90 : vector<8x64xi1> to vector<8x64xi32>
    %92 = arith.sitofp %91 : vector<8x64xi32> to vector<8x64xf32>
    %93 = arith.truncf %92 : vector<8x64xf32> to vector<8x64xbf16>
    %c192 = arith.constant 192 : index
    %c0_17 = arith.constant 0 : index
    %94 = vector.load %arg3[%c192, %c0_17] : memref<576x64xbf16, #tpu.memory_space<vmem>>, vector<64x64xbf16>
    %cst_18 = arith.constant dense<0.000000e+00> : vector<8x64xf32>
    %95 = tpu.matmul %93, %94, %cst_18 {dimension_numbers = #tpu.dot_dimension_numbers<[1], [0], [0], [1], [0, 0, 1, 1], [], []>} : vector<8x64xbf16>, vector<64x64xbf16>, vector<8x64xf32> -> vector<8x64xf32>
    %96 = arith.addf %82, %95 : vector<8x64xf32>
    %c32_i32 = arith.constant 32 : i32
    %97 = vector.broadcast %c32_i32 : i32 to vector<1x64xi32>
    %98 = arith.cmpi sge, %4, %97 : vector<1x64xi32>
    %99 = arith.extui %98 : vector<1x64xi1> to vector<1x64xi32>
    %100 = arith.sitofp %99 : vector<1x64xi32> to vector<1x64xf32>
    %c0_19 = arith.constant 0 : index
    %c0_20 = arith.constant 0 : index
    %101 = vector.load %arg4[%c0_19, %c0_20] : memref<64x64xf32, #tpu.memory_space<vmem>>, vector<1x64xf32>
    %102 = vector.broadcast %101 : vector<1x64xf32> to vector<8x64xf32>
    %103 = arith.addf %96, %102 : vector<8x64xf32>
    %cst_21 = arith.constant 0.000000e+00 : f32
    %104 = vector.broadcast %cst_21 : f32 to vector<8x64xf32>
    %105 = arith.maximumf %103, %104 : vector<8x64xf32>
    %c256 = arith.constant 256 : index
    %c0_22 = arith.constant 0 : index
    %106 = vector.load %arg3[%c256, %c0_22] : memref<576x64xbf16, #tpu.memory_space<vmem>>, vector<64x64xbf16>
    %107 = arith.truncf %105 : vector<8x64xf32> to vector<8x64xbf16>
    %cst_23 = arith.constant dense<0.000000e+00> : vector<8x64xf32>
    %108 = tpu.matmul %107, %106, %cst_23 {dimension_numbers = #tpu.dot_dimension_numbers<[1], [0], [0], [1], [0, 0, 1, 1], [], []>} : vector<8x64xbf16>, vector<64x64xbf16>, vector<8x64xf32> -> vector<8x64xf32>
    %c8 = arith.constant 8 : index
    %c0_24 = arith.constant 0 : index
    %109 = vector.load %arg4[%c8, %c0_24] : memref<64x64xf32, #tpu.memory_space<vmem>>, vector<1x64xf32>
    %110 = vector.broadcast %109 : vector<1x64xf32> to vector<8x64xf32>
    %111 = arith.addf %108, %110 : vector<8x64xf32>
    %112 = vector.broadcast %100 : vector<1x64xf32> to vector<8x64xf32>
    %113 = arith.mulf %105, %112 : vector<8x64xf32>
    %114 = arith.addf %111, %113 : vector<8x64xf32>
    %cst_25 = arith.constant 0.000000e+00 : f32
    %115 = vector.broadcast %cst_25 : f32 to vector<8x64xf32>
    %116 = arith.maximumf %114, %115 : vector<8x64xf32>
    %c320 = arith.constant 320 : index
    %c0_26 = arith.constant 0 : index
    %117 = vector.load %arg3[%c320, %c0_26] : memref<576x64xbf16, #tpu.memory_space<vmem>>, vector<64x64xbf16>
    %118 = arith.truncf %116 : vector<8x64xf32> to vector<8x64xbf16>
    %cst_27 = arith.constant dense<0.000000e+00> : vector<8x64xf32>
    %119 = tpu.matmul %118, %117, %cst_27 {dimension_numbers = #tpu.dot_dimension_numbers<[1], [0], [0], [1], [0, 0, 1, 1], [], []>} : vector<8x64xbf16>, vector<64x64xbf16>, vector<8x64xf32> -> vector<8x64xf32>
    %c16 = arith.constant 16 : index
    %c0_28 = arith.constant 0 : index
    %120 = vector.load %arg4[%c16, %c0_28] : memref<64x64xf32, #tpu.memory_space<vmem>>, vector<1x64xf32>
    %121 = vector.broadcast %120 : vector<1x64xf32> to vector<8x64xf32>
    %122 = arith.addf %119, %121 : vector<8x64xf32>
    %123 = vector.broadcast %100 : vector<1x64xf32> to vector<8x64xf32>
    %124 = arith.mulf %116, %123 : vector<8x64xf32>
    %125 = arith.addf %122, %124 : vector<8x64xf32>
    %cst_29 = arith.constant 0.000000e+00 : f32
    %126 = vector.broadcast %cst_29 : f32 to vector<8x64xf32>
    %127 = arith.maximumf %125, %126 : vector<8x64xf32>
    %c384 = arith.constant 384 : index
    %c0_30 = arith.constant 0 : index
    %128 = vector.load %arg3[%c384, %c0_30] : memref<576x64xbf16, #tpu.memory_space<vmem>>, vector<64x64xbf16>
    %129 = arith.truncf %127 : vector<8x64xf32> to vector<8x64xbf16>
    %cst_31 = arith.constant dense<0.000000e+00> : vector<8x64xf32>
    %130 = tpu.matmul %129, %128, %cst_31 {dimension_numbers = #tpu.dot_dimension_numbers<[1], [0], [0], [1], [0, 0, 1, 1], [], []>} : vector<8x64xbf16>, vector<64x64xbf16>, vector<8x64xf32> -> vector<8x64xf32>
    %c24 = arith.constant 24 : index
    %c0_32 = arith.constant 0 : index
    %131 = vector.load %arg4[%c24, %c0_32] : memref<64x64xf32, #tpu.memory_space<vmem>>, vector<1x64xf32>
    %132 = vector.broadcast %131 : vector<1x64xf32> to vector<8x64xf32>
    %133 = arith.addf %130, %132 : vector<8x64xf32>
    %cst_33 = arith.constant 0.000000e+00 : f32
    %134 = vector.broadcast %cst_33 : f32 to vector<8x64xf32>
    %135 = arith.maximumf %133, %134 : vector<8x64xf32>
    %c448 = arith.constant 448 : index
    %c0_34 = arith.constant 0 : index
    %136 = vector.load %arg3[%c448, %c0_34] : memref<576x64xbf16, #tpu.memory_space<vmem>>, vector<64x64xbf16>
    %137 = arith.truncf %135 : vector<8x64xf32> to vector<8x64xbf16>
    %cst_35 = arith.constant dense<0.000000e+00> : vector<8x64xf32>
    %138 = tpu.matmul %137, %136, %cst_35 {dimension_numbers = #tpu.dot_dimension_numbers<[1], [0], [0], [1], [0, 0, 1, 1], [], []>} : vector<8x64xbf16>, vector<64x64xbf16>, vector<8x64xf32> -> vector<8x64xf32>
    %c32 = arith.constant 32 : index
    %c0_36 = arith.constant 0 : index
    %139 = vector.load %arg4[%c32, %c0_36] : memref<64x64xf32, #tpu.memory_space<vmem>>, vector<1x64xf32>
    %140 = vector.broadcast %139 : vector<1x64xf32> to vector<8x64xf32>
    %141 = arith.addf %138, %140 : vector<8x64xf32>
    %142 = arith.addf %141, %135 : vector<8x64xf32>
    %cst_37 = arith.constant 0.000000e+00 : f32
    %143 = vector.broadcast %cst_37 : f32 to vector<8x64xf32>
    %144 = arith.maximumf %142, %143 : vector<8x64xf32>
    %c512 = arith.constant 512 : index
    %c0_38 = arith.constant 0 : index
    %145 = vector.load %arg3[%c512, %c0_38] : memref<576x64xbf16, #tpu.memory_space<vmem>>, vector<64x64xbf16>
    %146 = arith.truncf %144 : vector<8x64xf32> to vector<8x64xbf16>
    %cst_39 = arith.constant dense<0.000000e+00> : vector<8x64xf32>
    %147 = tpu.matmul %146, %145, %cst_39 {dimension_numbers = #tpu.dot_dimension_numbers<[1], [0], [0], [1], [0, 0, 1, 1], [], []>} : vector<8x64xbf16>, vector<64x64xbf16>, vector<8x64xf32> -> vector<8x64xf32>
    %c40 = arith.constant 40 : index
    %c0_40 = arith.constant 0 : index
    %148 = vector.load %arg4[%c40, %c0_40] : memref<64x64xf32, #tpu.memory_space<vmem>>, vector<1x64xf32>
    %149 = vector.broadcast %148 : vector<1x64xf32> to vector<8x64xf32>
    %150 = arith.addf %147, %149 : vector<8x64xf32>
    %151 = arith.addf %150, %144 : vector<8x64xf32>
    %cst_41 = arith.constant 0.000000e+00 : f32
    %152 = vector.broadcast %cst_41 : f32 to vector<8x64xf32>
    %153 = arith.maximumf %151, %152 : vector<8x64xf32>
    %154 = arith.mulf %153, %153 : vector<8x64xf32>
    %cst_42 = arith.constant dense<0.000000e+00> : vector<8xf32>
    %155 = vector.multi_reduction <add>, %154, %cst_42 [1] : vector<8x64xf32> to vector<8xf32>
    %156 = vector.shape_cast %155 : vector<8xf32> to vector<8x1xf32>
    %cst_43 = arith.constant 1.000000e-24 : f32
    %157 = vector.broadcast %cst_43 : f32 to vector<8x1xf32>
    %158 = arith.maximumf %156, %157 : vector<8x1xf32>
    %159 = math.rsqrt %158 : vector<8x1xf32>
    %160 = vector.broadcast %159 : vector<8x1xf32> to vector<8x64xf32>
    %161 = arith.mulf %153, %160 : vector<8x64xf32>
    %c0_44 = arith.constant 0 : index
    %c0_45 = arith.constant 0 : index
    %162 = vector.load %arg5[%c0_44, %c0_45] : memref<64x128xbf16, #tpu.memory_space<vmem>>, vector<64x128xbf16>
    %163 = arith.truncf %161 : vector<8x64xf32> to vector<8x64xbf16>
    %cst_46 = arith.constant dense<0.000000e+00> : vector<8x128xf32>
    %164 = tpu.matmul %163, %162, %cst_46 {dimension_numbers = #tpu.dot_dimension_numbers<[1], [0], [0], [1], [0, 0, 1, 1], [], []>} : vector<8x64xbf16>, vector<64x128xbf16>, vector<8x128xf32> -> vector<8x128xf32>
    %c0_47 = arith.constant 0 : index
    %c0_48 = arith.constant 0 : index
    %165 = vector.load %arg6[%c0_47, %c0_48] : memref<1x128xf32, #tpu.memory_space<vmem>>, vector<1x128xf32>
    %166 = vector.broadcast %165 : vector<1x128xf32> to vector<8x128xf32>
    %167 = arith.addf %164, %166 : vector<8x128xf32>
    %c0_49 = arith.constant 0 : index
    %c0_50 = arith.constant 0 : index
    %168 = vector.load %arg7[%c0_49, %c0_50] : memref<8x128xf32, #tpu.memory_space<vmem>>, vector<8x128xf32>
    tpu.vector_store %arg7[%c0_49, %c0_50], %167 {strides = array<i32>} : memref<8x128xf32, #tpu.memory_space<vmem>>, vector<8x128xf32>,
    return
  }
  func.func @transform_0(%arg0: i32) -> (i32, i32) {
    %c0_i32 = arith.constant 0 : i32
    %c0_i32_0 = arith.constant 0 : i32
    return %arg0, %c0_i32 : i32, i32
  }
  func.func @transform_1(%arg0: i32) -> (i32, i32) {
    %c0_i32 = arith.constant 0 : i32
    %c0_i32_0 = arith.constant 0 : i32
    return %arg0, %c0_i32 : i32, i32
  }
  func.func @transform_2(%arg0: i32) -> (i32, i32) {
    %c0_i32 = arith.constant 0 : i32
    %c0_i32_0 = arith.constant 0 : i32
    %c0_i32_1 = arith.constant 0 : i32
    return %c0_i32, %c0_i32_0 : i32, i32
  }
  func.func @transform_3(%arg0: i32) -> (i32, i32) {
    %c0_i32 = arith.constant 0 : i32
    %c0_i32_0 = arith.constant 0 : i32
    %c0_i32_1 = arith.constant 0 : i32
    return %c0_i32, %c0_i32_0 : i32, i32
  }
  func.func @transform_4(%arg0: i32) -> (i32, i32) {
    %c0_i32 = arith.constant 0 : i32
    %c0_i32_0 = arith.constant 0 : i32
    %c0_i32_1 = arith.constant 0 : i32
    return %c0_i32, %c0_i32_0 : i32, i32
  }
  func.func @transform_5(%arg0: i32) -> (i32, i32) {
    %c0_i32 = arith.constant 0 : i32
    %c0_i32_0 = arith.constant 0 : i32
    %c0_i32_1 = arith.constant 0 : i32
    return %c0_i32, %c0_i32_0 : i32, i32
  }
  func.func @transform_6(%arg0: i32) -> (i32, i32) {
    %c0_i32 = arith.constant 0 : i32
    %c0_i32_0 = arith.constant 0 : i32
    return %arg0, %c0_i32 : i32, i32
  }
}

</mosaic_0001>

<llo_original>
// kernel: tpu_custom_call.1
$region0: #{tpu_custom_call.1}
  #allocation0 [shape = 'u32[]', space=smem, size = 0x4, offset = 0x4, fixed_abs, tag = 'smem constant byte address 0x4 - core index']
  #allocation1 [shape = 'u32[72,128]{1,0:T(1,128)}', space=vmem, size = 0x9000, scoped, tag = 'internal scratch']
  %s0 = inlined_call_operand.vmem [shape: s32[8,7], index: 0, kind: input, shape index: {}]
  %s1 = inlined_call_operand.vmem [shape: f32[8,16], index: 1, kind: input, shape index: {}]
  %s2 = inlined_call_operand.vmem [shape: bf16[576,64], index: 2, kind: input, shape index: {}]
  %s3 = inlined_call_operand.vmem [shape: f32[64,64], index: 3, kind: input, shape index: {}]
  %s4 = inlined_call_operand.vmem [shape: bf16[64,128], index: 4, kind: input, shape index: {}]
  %s5 = inlined_call_operand.vmem [shape: f32[1,128], index: 5, kind: input, shape index: {}]
  %s6 = inlined_call_operand.hbm [shape: f32[8,128], index: 6, kind: output, shape index: {}]
  %s7 = sld [smem:[#allocation0]]
  $region34: #{tpu_custom_call.1} parent=0
    _
  %s9 = ssub.s32 1, %s7
  %s10 = scalar_select 0, %s9, %s7
  $region1: #{tpu_custom_call.1} parent=0
    #allocation2 [shape = 'u8[4096]{0}', space=vmem, size = 0x1000, scoped, tag = 'output window, operand 0, single buffered']
    #allocation3 [shape = 's32[1]{0}', space=sflag, size = 0x4, scoped, tag = 'scoped memory for tpu_custom_call.1']
    %11 = vsyncpa [#allocation3], 0
    // Predicated region
    $region2: #{tpu_custom_call.1} parent=1 // pred_check
      _
    $region3: #{tpu_custom_call.1} parent=1 // pred_check_branch
      %13 = sbr.rel (0) target = $region5
    $region4: #{tpu_custom_call.1} parent=1 // pred_region
      _
    $region5: #{tpu_custom_call.1} parent=1 // pred_fallthru
      _
    // Predicated region
    $region6: #{tpu_custom_call.1} parent=1 // pred_check
      _
    $region7: #{tpu_custom_call.1} parent=1 // pred_check_branch
      %15 = sbr.rel (0) target = $region9
    $region8: #{tpu_custom_call.1} parent=1 // pred_region
      _
    $region9: #{tpu_custom_call.1} parent=1 // pred_fallthru
      _
    // Predicated region
    $region10: #{tpu_custom_call.1} parent=1 // pred_check
      _
    $region11: #{tpu_custom_call.1} parent=1 // pred_check_branch
      %17 = sbr.rel (0) target = $region13
    $region12: #{tpu_custom_call.1} parent=1 // pred_region
      _
    $region13: #{tpu_custom_call.1} parent=1 // pred_fallthru
      _
    // Predicated region
    $region14: #{tpu_custom_call.1} parent=1 // pred_check
      _
    $region15: #{tpu_custom_call.1} parent=1 // pred_check_branch
      %19 = sbr.rel (0) target = $region17
    $region16: #{tpu_custom_call.1} parent=1 // pred_region
      _
    $region17: #{tpu_custom_call.1} parent=1 // pred_fallthru
      _
    // Predicated region
    $region18: #{tpu_custom_call.1} parent=1 // pred_check
      _
    $region19: #{tpu_custom_call.1} parent=1 // pred_check_branch
      %21 = sbr.rel (0) target = $region21
    $region20: #{tpu_custom_call.1} parent=1 // pred_region
      _
    $region21: #{tpu_custom_call.1} parent=1 // pred_fallthru
      _
    // Predicated region
    $region22: #{tpu_custom_call.1} parent=1 // pred_check
      _
    $region23: #{tpu_custom_call.1} parent=1 // pred_check_branch
      %23 = sbr.rel (0) target = $region25
    $region24: #{tpu_custom_call.1} parent=1 // pred_region
      _
    $region25: #{tpu_custom_call.1} parent=1 // pred_fallthru
      _
    %v25 = vld [vmem:[%s1] sm:$0xff]
    %v26 = vld [vmem:[%s3 + $0x30] sm:$0xff]
    %v27 = vld [vmem:[%s3 + $0x38] sm:$0xff]
    %v28 = vld [vmem:[%s0] sm:$0xff]
    %v29 = vlaneseq
    %v30 = vand.u32 %v29, 127
    %31 = vset.pattern.permute.xlu0 0
    %32 = vperm.xlu0 %31, %v28
    %v33 = vpop.permute.xlu0 %32
    %vm34 = vcmp.eq.s32.totalorder %v33, %v30
    %vm35 = vcmp.ge.s32.totalorder %v28, 0
    %v36 = vsel %vm35, 1, 0
    %37 = vset.pattern.permute.xlu0 0
    %38 = vperm.xlu0 %37, %v36
    %v39 = vpop.permute.xlu0 %38
    %vm40 = vcmp.eq.s32.totalorder %v39, 1
    %vm41 = vmand %vm34, %vm40
    %v42 = vsel %vm41, 1, 0
    %v43 = vcvt.s32.f32 %v42
    %v44 = vpack.c.bf16 %v43, %v43
    %45 = vset.pattern.permute.xlu0 1
    %46 = vperm.xlu0 %45, %v28
    %v47 = vpop.permute.xlu0 %46
    %vm48 = vcmp.eq.s32.totalorder %v47, %v30
    %49 = vset.pattern.permute.xlu0 1
    %50 = vperm.xlu0 %49, %v36
    %v51 = vpop.permute.xlu0 %50
    %vm52 = vcmp.eq.s32.totalorder %v51, 1
    %vm53 = vmand %vm48, %vm52
    %v54 = vsel %vm53, 1, 0
    %v55 = vcvt.s32.f32 %v54
    %v56 = vpack.c.bf16 %v55, %v55
    %v57 = vunpack.c.l.bf16 %v44
    %v58 = vunpack.c.l.bf16 %v56
    %v59 = vadd.f32 %v57, %v58
    %v60 = vpack.c.bf16 %v59, %v59
    %v61 = vld [vmem:[%s2] sm:$0xf]
    %v62 = vld [vmem:[%s2 + $0x4] sm:$0xf]
    %v63 = vld [vmem:[%s2 + $0x8] sm:$0xf]
    %v64 = vld [vmem:[%s2 + $0xc] sm:$0xf]
    %v65 = vld [vmem:[%s2 + $0x10] sm:$0xf]
    %v66 = vld [vmem:[%s2 + $0x14] sm:$0xf]
    %v67 = vld [vmem:[%s2 + $0x18] sm:$0xf]
    %v68 = vld [vmem:[%s2 + $0x1c] sm:$0xf]
    %v77 = vunpack.c.l.b16 %v61
    %v78 = vunpack.c.l.b16 %v62
    %v79 = vunpack.c.l.b16 %v63
    %v80 = vunpack.c.l.b16 %v64
    %v81 = vunpack.c.l.b16 %v65
    %v82 = vunpack.c.l.b16 %v66
    %v83 = vunpack.c.l.b16 %v67
    %v84 = vunpack.c.l.b16 %v68
    %v85 = vpack.c.b16 %v78, %v77
    %v86 = vpack.c.b16 %v80, %v79
    %v87 = vpack.c.b16 %v82, %v81
    %v88 = vpack.c.b16 %v84, %v83
    %vm93 = vcmask 523264
    %v95 = vsel %vm93, %v60, 0
    %97 = vmatpush.bf16.msra.mxu0 0
    %98 = vmatpush.bf16.msra.mxu0 0
    %99 = vmatpush.bf16.msra.mxu0 0
    %100 = vmatpush.bf16.msra.mxu0 0
    %101 = vmatpush.bf16.msra.mxu0 %v88
    %102 = vmatpush.bf16.msra.mxu0 %v87
    %103 = vmatpush.bf16.msra.mxu0 %v86
    %104 = vmatpush.bf16.msra.mxu0 %v85
    %105 = vmatmul.bf16.gmra.mxu0 %v95
    %v106 = vpop.f32.mrf.mxu0
    %v107 = vadd.f32 0.0, %v106
    %v108 = vpop.f32.mrf.mxu0
    %109 = vdwg.mxu0
    %vm110 = vcmask 130048
    %v112 = vsel %vm110, %v25, 0
    %114 = vmatpush.msra.mxu0 0.0
    %115 = vmatpush.msra.mxu0 0.0
    %116 = vmatpush.msra.mxu0 0.0
    %117 = vmatpush.msra.mxu0 0.0
    %118 = vmatpush.msra.mxu0 0.0
    %119 = vmatpush.msra.mxu0 0.0
    %120 = vmatpush.msra.mxu0 0.0
    %121 = vmatpush.msra.mxu0 0.0
    %122 = vmatpush.msra.mxu0 0.0
    %123 = vmatpush.msra.mxu0 0.0
    %124 = vmatpush.msra.mxu0 0.0
    %125 = vmatpush.msra.mxu0 0.0
    %126 = vmatpush.msra.mxu0 0.0
    %127 = vmatpush.msra.mxu0 0.0
    %128 = vmatpush.msra.mxu0 %v27
    %129 = vmatpush.msra.mxu0 %v26
    %130 = vmatmul.f32.gmra.mxu0 %v112
    %v131 = vpop.f32.mrf.mxu0
    %v132 = vadd.f32 %v107, %v131
    %133 = vdwg.mxu0
    %134 = vset.pattern.permute.xlu0 2
    %135 = vperm.xlu0 %134, %v28
    %v136 = vpop.permute.xlu0 %135
    %vm137 = vcmp.eq.s32.totalorder %v136, %v30
    %138 = vset.pattern.permute.xlu0 2
    %139 = vperm.xlu0 %138, %v36
    %v140 = vpop.permute.xlu0 %139
    %vm141 = vcmp.eq.s32.totalorder %v140, 1
    %vm142 = vmand %vm137, %vm141
    %v143 = vsel %vm142, 1, 0
    %v144 = vcvt.s32.f32 %v143
    %v145 = vpack.c.bf16 %v144, %v144
    %146 = vset.pattern.permute.xlu0 3
    %147 = vperm.xlu0 %146, %v28
    %v148 = vpop.permute.xlu0 %147
    %vm149 = vcmp.eq.s32.totalorder %v148, %v30
    %150 = vset.pattern.permute.xlu0 3
    %151 = vperm.xlu0 %150, %v36
    %v152 = vpop.permute.xlu0 %151
    %vm153 = vcmp.eq.s32.totalorder %v152, 1
    %vm154 = vmand %vm149, %vm153
    %v155 = vsel %vm154, 1, 0
    %v156 = vcvt.s32.f32 %v155
    %v157 = vpack.c.bf16 %v156, %v156
    %v158 = vunpack.c.l.bf16 %v145
    %v159 = vunpack.c.l.bf16 %v157
    %v160 = vadd.f32 %v158, %v159
    %v161 = vpack.c.bf16 %v160, %v160
    %162 = vset.pattern.permute.xlu0 4
    %163 = vperm.xlu0 %162, %v28
    %v164 = vpop.permute.xlu0 %163
    %vm165 = vcmp.eq.s32.totalorder %v164, %v30
    %166 = vset.pattern.permute.xlu0 4
    %167 = vperm.xlu0 %166, %v36
    %v168 = vpop.permute.xlu0 %167
    %vm169 = vcmp.eq.s32.totalorder %v168, 1
    %vm170 = vmand %vm165, %vm169
    %v171 = vsel %vm170, 1, 0
    %v172 = vcvt.s32.f32 %v171
    %v173 = vpack.c.bf16 %v172, %v172
    %v174 = vunpack.c.l.bf16 %v161
    %v175 = vunpack.c.l.bf16 %v173
    %v176 = vadd.f32 %v174, %v175
    %v177 = vpack.c.bf16 %v176, %v176
    %v178 = vld [vmem:[%s2 + $0x20] sm:$0xf]
    %v179 = vld [vmem:[%s2 + $0x24] sm:$0xf]
    %v180 = vld [vmem:[%s2 + $0x28] sm:$0xf]
    %v181 = vld [vmem:[%s2 + $0x2c] sm:$0xf]
    %v182 = vld [vmem:[%s2 + $0x30] sm:$0xf]
    %v183 = vld [vmem:[%s2 + $0x34] sm:$0xf]
    %v184 = vld [vmem:[%s2 + $0x38] sm:$0xf]
    %v185 = vld [vmem:[%s2 + $0x3c] sm:$0xf]
    %v194 = vunpack.c.l.b16 %v178
    %v195 = vunpack.c.l.b16 %v179
    %v196 = vunpack.c.l.b16 %v180
    %v197 = vunpack.c.l.b16 %v181
    %v198 = vunpack.c.l.b16 %v182
    %v199 = vunpack.c.l.b16 %v183
    %v200 = vunpack.c.l.b16 %v184
    %v201 = vunpack.c.l.b16 %v185
    %v202 = vpack.c.b16 %v195, %v194
    %v203 = vpack.c.b16 %v197, %v196
    %v204 = vpack.c.b16 %v199, %v198
    %v205 = vpack.c.b16 %v201, %v200
    %v211 = vsel %vm93, %v177, 0
    %213 = vmatpush.bf16.msra.mxu0 0
    %214 = vmatpush.bf16.msra.mxu0 0
    %215 = vmatpush.bf16.msra.mxu0 0
    %216 = vmatpush.bf16.msra.mxu0 0
    %217 = vmatpush.bf16.msra.mxu0 %v205
    %218 = vmatpush.bf16.msra.mxu0 %v204
    %219 = vmatpush.bf16.msra.mxu0 %v203
    %220 = vmatpush.bf16.msra.mxu0 %v202
    %221 = vmatmul.bf16.gmra.mxu0 %v211
    %v222 = vpop.f32.mrf.mxu0
    %v223 = vadd.f32 0.0, %v222
    %v224 = vpop.f32.mrf.mxu0
    %225 = vdwg.mxu0
    %v226 = vadd.f32 %v132, %v223
    %227 = vset.pattern.permute.xlu0 5
    %228 = vperm.xlu0 %227, %v28
    %v229 = vpop.permute.xlu0 %228
    %vm230 = vcmp.eq.s32.totalorder %v229, %v30
    %231 = vset.pattern.permute.xlu0 5
    %232 = vperm.xlu0 %231, %v36
    %v233 = vpop.permute.xlu0 %232
    %vm234 = vcmp.eq.s32.totalorder %v233, 1
    %vm235 = vmand %vm230, %vm234
    %v236 = vsel %vm235, 1, 0
    %v237 = vcvt.s32.f32 %v236
    %v238 = vpack.c.bf16 %v237, %v237
    %v239 = vld [vmem:[%s2 + $0x40] sm:$0xf]
    %v240 = vld [vmem:[%s2 + $0x44] sm:$0xf]
    %v241 = vld [vmem:[%s2 + $0x48] sm:$0xf]
    %v242 = vld [vmem:[%s2 + $0x4c] sm:$0xf]
    %v243 = vld [vmem:[%s2 + $0x50] sm:$0xf]
    %v244 = vld [vmem:[%s2 + $0x54] sm:$0xf]
    %v245 = vld [vmem:[%s2 + $0x58] sm:$0xf]
    %v246 = vld [vmem:[%s2 + $0x5c] sm:$0xf]
    %v255 = vunpack.c.l.b16 %v239
    %v256 = vunpack.c.l.b16 %v240
    %v257 = vunpack.c.l.b16 %v241
    %v258 = vunpack.c.l.b16 %v242
    %v259 = vunpack.c.l.b16 %v243
    %v260 = vunpack.c.l.b16 %v244
    %v261 = vunpack.c.l.b16 %v245
    %v262 = vunpack.c.l.b16 %v246
    %v263 = vpack.c.b16 %v256, %v255
    %v264 = vpack.c.b16 %v258, %v257
    %v265 = vpack.c.b16 %v260, %v259
    %v266 = vpack.c.b16 %v262, %v261
    %v272 = vsel %vm93, %v238, 0
    %274 = vmatpush.bf16.msra.mxu0 0
    %275 = vmatpush.bf16.msra.mxu0 0
    %276 = vmatpush.bf16.msra.mxu0 0
    %277 = vmatpush.bf16.msra.mxu0 0
    %278 = vmatpush.bf16.msra.mxu0 %v266
    %279 = vmatpush.bf16.msra.mxu0 %v265
    %280 = vmatpush.bf16.msra.mxu0 %v264
    %281 = vmatpush.bf16.msra.mxu0 %v263
    %282 = vmatmul.bf16.gmra.mxu0 %v272
    %v283 = vpop.f32.mrf.mxu0
    %v284 = vadd.f32 0.0, %v283
    %v285 = vpop.f32.mrf.mxu0
    %286 = vdwg.mxu0
    %v287 = vadd.f32 %v226, %v284
    %288 = vset.pattern.permute.xlu0 6
    %289 = vperm.xlu0 %288, %v28
    %v290 = vpop.permute.xlu0 %289
    %vm291 = vcmp.eq.s32.totalorder %v290, %v30
    %292 = vset.pattern.permute.xlu0 6
    %293 = vperm.xlu0 %292, %v36
    %v294 = vpop.permute.xlu0 %293
    %vm295 = vcmp.eq.s32.totalorder %v294, 1
    %vm296 = vmand %vm291, %vm295
    %v297 = vsel %vm296, 1, 0
    %v298 = vcvt.s32.f32 %v297
    %v299 = vpack.c.bf16 %v298, %v298
    %v300 = vld [vmem:[%s2 + $0x60] sm:$0xf]
    %v301 = vld [vmem:[%s2 + $0x64] sm:$0xf]
    %v302 = vld [vmem:[%s2 + $0x68] sm:$0xf]
    %v303 = vld [vmem:[%s2 + $0x6c] sm:$0xf]
    %v304 = vld [vmem:[%s2 + $0x70] sm:$0xf]
    %v305 = vld [vmem:[%s2 + $0x74] sm:$0xf]
    %v306 = vld [vmem:[%s2 + $0x78] sm:$0xf]
    %v307 = vld [vmem:[%s2 + $0x7c] sm:$0xf]
    %v316 = vunpack.c.l.b16 %v300
    %v317 = vunpack.c.l.b16 %v301
    %v318 = vunpack.c.l.b16 %v302
    %v319 = vunpack.c.l.b16 %v303
    %v320 = vunpack.c.l.b16 %v304
    %v321 = vunpack.c.l.b16 %v305
    %v322 = vunpack.c.l.b16 %v306
    %v323 = vunpack.c.l.b16 %v307
    %v324 = vpack.c.b16 %v317, %v316
    %v325 = vpack.c.b16 %v319, %v318
    %v326 = vpack.c.b16 %v321, %v320
    %v327 = vpack.c.b16 %v323, %v322
    %v333 = vsel %vm93, %v299, 0
    %335 = vmatpush.bf16.msra.mxu0 0
    %336 = vmatpush.bf16.msra.mxu0 0
    %337 = vmatpush.bf16.msra.mxu0 0
    %338 = vmatpush.bf16.msra.mxu0 0
    %339 = vmatpush.bf16.msra.mxu0 %v327
    %340 = vmatpush.bf16.msra.mxu0 %v326
    %341 = vmatpush.bf16.msra.mxu0 %v325
    %342 = vmatpush.bf16.msra.mxu0 %v324
    %343 = vmatmul.bf16.gmra.mxu0 %v333
    %v344 = vpop.f32.mrf.mxu0
    %v345 = vadd.f32 0.0, %v344
    %v346 = vpop.f32.mrf.mxu0
    %347 = vdwg.mxu0
    %v348 = vadd.f32 %v287, %v345
    %vm349 = vcmp.ge.s32.totalorder %v30, 32
    %v350 = vsel %vm349, 1, 0
    %v351 = vcvt.s32.f32 %v350
    %v352 = vld [vmem:[%s3] sm:$0x1]
    %v353 = vperm.slane %v352, 0
    %v354 = vadd.f32 %v348, %v353
    %v355 = vmax.f32 %v354, 0.0
    %v356 = vld [vmem:[%s2 + $0x80] sm:$0xf]
    %v357 = vld [vmem:[%s2 + $0x84] sm:$0xf]
    %v358 = vld [vmem:[%s2 + $0x88] sm:$0xf]
    %v359 = vld [vmem:[%s2 + $0x8c] sm:$0xf]
    %v360 = vld [vmem:[%s2 + $0x90] sm:$0xf]
    %v361 = vld [vmem:[%s2 + $0x94] sm:$0xf]
    %v362 = vld [vmem:[%s2 + $0x98] sm:$0xf]
    %v363 = vld [vmem:[%s2 + $0x9c] sm:$0xf]
    %v364 = vpack.c.bf16 %v355, %v355
    %v365 = vld [vmem:[%s3 + $0x8] sm:$0x1]
    %v366 = vperm.slane %v365, 0
    %v375 = vunpack.c.l.b16 %v356
    %v376 = vunpack.c.l.b16 %v357
    %v377 = vunpack.c.l.b16 %v358
    %v378 = vunpack.c.l.b16 %v359
    %v379 = vunpack.c.l.b16 %v360
    %v380 = vunpack.c.l.b16 %v361
    %v381 = vunpack.c.l.b16 %v362
    %v382 = vunpack.c.l.b16 %v363
    %v383 = vpack.c.b16 %v376, %v375
    %v384 = vpack.c.b16 %v378, %v377
    %v385 = vpack.c.b16 %v380, %v379
    %v386 = vpack.c.b16 %v382, %v381
    %v392 = vsel %vm93, %v364, 0
    %394 = vmatpush.bf16.msra.mxu0 0
    %395 = vmatpush.bf16.msra.mxu0 0
    %396 = vmatpush.bf16.msra.mxu0 0
    %397 = vmatpush.bf16.msra.mxu0 0
    %398 = vmatpush.bf16.msra.mxu0 %v386
    %399 = vmatpush.bf16.msra.mxu0 %v385
    %400 = vmatpush.bf16.msra.mxu0 %v384
    %401 = vmatpush.bf16.msra.mxu0 %v383
    %402 = vmatmul.bf16.gmra.mxu0 %v392
    %v403 = vpop.f32.mrf.mxu0
    %v404 = vadd.f32 %v366, %v403
    %v405 = vpop.f32.mrf.mxu0
    %406 = vdwg.mxu0
    %v407 = vmul.f32 %v355, %v351
    %v408 = vadd.f32 %v404, %v407
    %v409 = vmax.f32 %v408, 0.0
    %v410 = vld [vmem:[%s2 + $0xa0] sm:$0xf]
    %v411 = vld [vmem:[%s2 + $0xa4] sm:$0xf]
    %v412 = vld [vmem:[%s2 + $0xa8] sm:$0xf]
    %v413 = vld [vmem:[%s2 + $0xac] sm:$0xf]
    %v414 = vld [vmem:[%s2 + $0xb0] sm:$0xf]
    %v415 = vld [vmem:[%s2 + $0xb4] sm:$0xf]
    %v416 = vld [vmem:[%s2 + $0xb8] sm:$0xf]
    %v417 = vld [vmem:[%s2 + $0xbc] sm:$0xf]
    %v418 = vpack.c.bf16 %v409, %v409
    %v419 = vld [vmem:[%s3 + $0x10] sm:$0x1]
    %v420 = vperm.slane %v419, 0
    %v429 = vunpack.c.l.b16 %v410
    %v430 = vunpack.c.l.b16 %v411
    %v431 = vunpack.c.l.b16 %v412
    %v432 = vunpack.c.l.b16 %v413
    %v433 = vunpack.c.l.b16 %v414
    %v434 = vunpack.c.l.b16 %v415
    %v435 = vunpack.c.l.b16 %v416
    %v436 = vunpack.c.l.b16 %v417
    %v437 = vpack.c.b16 %v430, %v429
    %v438 = vpack.c.b16 %v432, %v431
    %v439 = vpack.c.b16 %v434, %v433
    %v440 = vpack.c.b16 %v436, %v435
    %v446 = vsel %vm93, %v418, 0
    %448 = vmatpush.bf16.msra.mxu0 0
    %449 = vmatpush.bf16.msra.mxu0 0
    %450 = vmatpush.bf16.msra.mxu0 0
    %451 = vmatpush.bf16.msra.mxu0 0
    %452 = vmatpush.bf16.msra.mxu0 %v440
    %453 = vmatpush.bf16.msra.mxu0 %v439
    %454 = vmatpush.bf16.msra.mxu0 %v438
    %455 = vmatpush.bf16.msra.mxu0 %v437
    %456 = vmatmul.bf16.gmra.mxu0 %v446
    %v457 = vpop.f32.mrf.mxu0
    %v458 = vadd.f32 %v420, %v457
    %v459 = vpop.f32.mrf.mxu0
    %460 = vdwg.mxu0
    %v461 = vmul.f32 %v409, %v351
    %v462 = vadd.f32 %v458, %v461
    %v463 = vmax.f32 %v462, 0.0
    %v464 = vld [vmem:[%s2 + $0xc0] sm:$0xf]
    %v465 = vld [vmem:[%s2 + $0xc4] sm:$0xf]
    %v466 = vld [vmem:[%s2 + $0xc8] sm:$0xf]
    %v467 = vld [vmem:[%s2 + $0xcc] sm:$0xf]
    %v468 = vld [vmem:[%s2 + $0xd0] sm:$0xf]
    %v469 = vld [vmem:[%s2 + $0xd4] sm:$0xf]
    %v470 = vld [vmem:[%s2 + $0xd8] sm:$0xf]
    %v471 = vld [vmem:[%s2 + $0xdc] sm:$0xf]
    %v472 = vpack.c.bf16 %v463, %v463
    %v473 = vld [vmem:[%s3 + $0x18] sm:$0x1]
    %v474 = vperm.slane %v473, 0
    %v483 = vunpack.c.l.b16 %v464
    %v484 = vunpack.c.l.b16 %v465
    %v485 = vunpack.c.l.b16 %v466
    %v486 = vunpack.c.l.b16 %v467
    %v487 = vunpack.c.l.b16 %v468
    %v488 = vunpack.c.l.b16 %v469
    %v489 = vunpack.c.l.b16 %v470
    %v490 = vunpack.c.l.b16 %v471
    %v491 = vpack.c.b16 %v484, %v483
    %v492 = vpack.c.b16 %v486, %v485
    %v493 = vpack.c.b16 %v488, %v487
    %v494 = vpack.c.b16 %v490, %v489
    %v500 = vsel %vm93, %v472, 0
    %502 = vmatpush.bf16.msra.mxu0 0
    %503 = vmatpush.bf16.msra.mxu0 0
    %504 = vmatpush.bf16.msra.mxu0 0
    %505 = vmatpush.bf16.msra.mxu0 0
    %506 = vmatpush.bf16.msra.mxu0 %v494
    %507 = vmatpush.bf16.msra.mxu0 %v493
    %508 = vmatpush.bf16.msra.mxu0 %v492
    %509 = vmatpush.bf16.msra.mxu0 %v491
    %510 = vmatmul.bf16.gmra.mxu0 %v500
    %v511 = vpop.f32.mrf.mxu0
    %v512 = vadd.f32 %v474, %v511
    %v513 = vpop.f32.mrf.mxu0
    %514 = vdwg.mxu0
    %v515 = vmax.f32 %v512, 0.0
    %v516 = vld [vmem:[%s2 + $0xe0] sm:$0xf]
    %v517 = vld [vmem:[%s2 + $0xe4] sm:$0xf]
    %v518 = vld [vmem:[%s2 + $0xe8] sm:$0xf]
    %v519 = vld [vmem:[%s2 + $0xec] sm:$0xf]
    %v520 = vld [vmem:[%s2 + $0xf0] sm:$0xf]
    %v521 = vld [vmem:[%s2 + $0xf4] sm:$0xf]
    %v522 = vld [vmem:[%s2 + $0xf8] sm:$0xf]
    %v523 = vld [vmem:[%s2 + $0xfc] sm:$0xf]
    %v524 = vpack.c.bf16 %v515, %v515
    %v525 = vld [vmem:[%s3 + $0x20] sm:$0x1]
    %v526 = vperm.slane %v525, 0
    %v535 = vunpack.c.l.b16 %v516
    %v536 = vunpack.c.l.b16 %v517
    %v537 = vunpack.c.l.b16 %v518
    %v538 = vunpack.c.l.b16 %v519
    %v539 = vunpack.c.l.b16 %v520
    %v540 = vunpack.c.l.b16 %v521
    %v541 = vunpack.c.l.b16 %v522
    %v542 = vunpack.c.l.b16 %v523
    %v543 = vpack.c.b16 %v536, %v535
    %v544 = vpack.c.b16 %v538, %v537
    %v545 = vpack.c.b16 %v540, %v539
    %v546 = vpack.c.b16 %v542, %v541
    %v552 = vsel %vm93, %v524, 0
    %554 = vmatpush.bf16.msra.mxu0 0
    %555 = vmatpush.bf16.msra.mxu0 0
    %556 = vmatpush.bf16.msra.mxu0 0
    %557 = vmatpush.bf16.msra.mxu0 0
    %558 = vmatpush.bf16.msra.mxu0 %v546
    %559 = vmatpush.bf16.msra.mxu0 %v545
    %560 = vmatpush.bf16.msra.mxu0 %v544
    %561 = vmatpush.bf16.msra.mxu0 %v543
    %562 = vmatmul.bf16.gmra.mxu0 %v552
    %v563 = vpop.f32.mrf.mxu0
    %v564 = vadd.f32 %v526, %v563
    %v565 = vpop.f32.mrf.mxu0
    %566 = vdwg.mxu0
    %v567 = vadd.f32 %v564, %v515
    %v568 = vmax.f32 %v567, 0.0
    %v569 = vld [vmem:[%s2 + $0x100] sm:$0xf]
    %v570 = vld [vmem:[%s2 + $0x104] sm:$0xf]
    %v571 = vld [vmem:[%s2 + $0x108] sm:$0xf]
    %v572 = vld [vmem:[%s2 + $0x10c] sm:$0xf]
    %v573 = vld [vmem:[%s2 + $0x110] sm:$0xf]
    %v574 = vld [vmem:[%s2 + $0x114] sm:$0xf]
    %v575 = vld [vmem:[%s2 + $0x118] sm:$0xf]
    %v576 = vld [vmem:[%s2 + $0x11c] sm:$0xf]
    %v577 = vpack.c.bf16 %v568, %v568
    %v578 = vld [vmem:[%s3 + $0x28] sm:$0x1]
    %v579 = vperm.slane %v578, 0
    %v588 = vunpack.c.l.b16 %v569
    %v589 = vunpack.c.l.b16 %v570
    %v590 = vunpack.c.l.b16 %v571
    %v591 = vunpack.c.l.b16 %v572
    %v592 = vunpack.c.l.b16 %v573
    %v593 = vunpack.c.l.b16 %v574
    %v594 = vunpack.c.l.b16 %v575
    %v595 = vunpack.c.l.b16 %v576
    %v596 = vpack.c.b16 %v589, %v588
    %v597 = vpack.c.b16 %v591, %v590
    %v598 = vpack.c.b16 %v593, %v592
    %v599 = vpack.c.b16 %v595, %v594
    %v605 = vsel %vm93, %v577, 0
    %607 = vmatpush.bf16.msra.mxu0 0
    %608 = vmatpush.bf16.msra.mxu0 0
    %609 = vmatpush.bf16.msra.mxu0 0
    %610 = vmatpush.bf16.msra.mxu0 0
    %611 = vmatpush.bf16.msra.mxu0 %v599
    %612 = vmatpush.bf16.msra.mxu0 %v598
    %613 = vmatpush.bf16.msra.mxu0 %v597
    %614 = vmatpush.bf16.msra.mxu0 %v596
    %615 = vmatmul.bf16.gmra.mxu0 %v605
    %v616 = vpop.f32.mrf.mxu0
    %v617 = vadd.f32 %v579, %v616
    %v618 = vpop.f32.mrf.mxu0
    %619 = vdwg.mxu0
    %v620 = vadd.f32 %v617, %v568
    %v621 = vmax.f32 %v620, 0.0
    %v622 = vmul.f32 %v621, %v621
    %v623 = vsel %vm93, %v622, 0.0
    %624 = vadd.xlane.f32.xlu0 %v623
    %v625 = vpop.xlane.xlu0 %624
    %v626 = vmax.f32 %v625, 1e-24
    %v627 = vrsqrt.pop %v626
    %v628 = vmul.f32 %v627, %v626
    %v629 = vmul.f32 %v628, %v627
    %v630 = vmul.f32 0.5, %v629
    %v631 = vsub.f32 1.5, %v630
    %v632 = vmul.f32 %v627, %v631
    %vm633 = vweird.f32 %v626
    %vm634 = vweird.f32 %v627
    %vm635 = vmor %vm633, %vm634
    %v636 = vsel %vm635, %v627, %v632
    %v637 = vmul.f32 %v621, %v636
    %v638 = vld [vmem:[%s4] sm:$0xf]
    %v639 = vld [vmem:[%s4 + $0x4] sm:$0xf]
    %v640 = vld [vmem:[%s4 + $0x8] sm:$0xf]
    %v641 = vld [vmem:[%s4 + $0xc] sm:$0xf]
    %v642 = vld [vmem:[%s4 + $0x10] sm:$0xf]
    %v643 = vld [vmem:[%s4 + $0x14] sm:$0xf]
    %v644 = vld [vmem:[%s4 + $0x18] sm:$0xf]
    %v645 = vld [vmem:[%s4 + $0x1c] sm:$0xf]
    %v646 = vpack.c.bf16 %v637, %v637
    %v647 = vld [vmem:[%s5] sm:$0x1]
    %v649 = vperm.slane %v647, 0
    %v659 = vunpack.c.l.b16 %v638
    %v660 = vunpack.c.l.b16 %v639
    %v661 = vunpack.c.l.b16 %v640
    %v662 = vunpack.c.l.b16 %v641
    %v663 = vunpack.c.l.b16 %v642
    %v664 = vunpack.c.l.b16 %v643
    %v665 = vunpack.c.l.b16 %v644
    %v666 = vunpack.c.l.b16 %v645
    %v667 = vpack.c.b16 %v660, %v659
    %v668 = vpack.c.b16 %v662, %v661
    %v669 = vpack.c.b16 %v664, %v663
    %v670 = vpack.c.b16 %v666, %v665
    %v676 = vsel %vm93, %v646, 0
    %678 = vmatpush.bf16.msra.mxu0 0
    %679 = vmatpush.bf16.msra.mxu0 0
    %680 = vmatpush.bf16.msra.mxu0 0
    %681 = vmatpush.bf16.msra.mxu0 0
    %682 = vmatpush.bf16.msra.mxu0 %v670
    %683 = vmatpush.bf16.msra.mxu0 %v669
    %684 = vmatpush.bf16.msra.mxu0 %v668
    %685 = vmatpush.bf16.msra.mxu0 %v667
    %686 = vmatmul.bf16.gmra.mxu0 %v676
    %v687 = vpop.f32.mrf.mxu0
    %v688 = vadd.f32 %v649, %v687
    %v689 = vpop.f32.mrf.mxu0
    %690 = vdwg.mxu0
    %691 = vst [vmem:[#allocation2] sm:$0xff] %v688
    // Predicated region
    $region26: #{tpu_custom_call.1} parent=1 // pred_check
      _
    $region27: #{tpu_custom_call.1} parent=1 // pred_check_branch
      %693 = sbr.rel (0) target = $region29
    $region28: #{tpu_custom_call.1} parent=1 // pred_region
      %695 = vsyncadd [#allocation3], 0
      %s697 = sshll.u32 [#allocation2], 4
      %s698 = int_to_ptr.vmem [resolvable:$true] %s697
      %s699 = sshll.u32 %s6, 4
      %s700 = int_to_ptr.hbm [resolvable:$true] %s699
      %702 = dma.vmem_to_hbm [thread:$0]  %s698, 128, %s700, [#allocation3]
    $region29: #{tpu_custom_call.1} parent=1 // pred_fallthru
      _
    // Predicated region
    $region30: #{tpu_custom_call.1} parent=1 // pred_check
      _
    $region31: #{tpu_custom_call.1} parent=1 // pred_check_branch
      %704 = sbr.rel (0) target = $region33
    $region32: #{tpu_custom_call.1} parent=1 // pred_region
      %706 = dma.done [#allocation3], 128
    $region33: #{tpu_custom_call.1} parent=1 // pred_fallthru
      _
    %707 = vsyncpa [#allocation3], 1

</llo_original>
